<compile_context>
chip_gen: v7x
topology: tpu7x:2x2x1
jax: 0.10.0
libtpu: 0.0.40
codegen_flags: <defaults>
</compile_context>

<pallas_src>
import jax
import jax.numpy as jnp
from jax.experimental import pallas as pl
from jax.experimental.pallas import tpu as pltpu


def _round_up(x, m):
    return ((x + m - 1) // m) * m


def mine_kernel(xT_ref, w1_ref, b1_ref, w2_ref, b2_ref, w3_ref, b3_ref, out_ref):
    # Per-tile shapes: xT (IN, TB), w1 (H, IN), b1 (H, 1), w2 (H, H), b2 (H, 1),
    # w3 (O, H), b3 (1, 1) in SMEM, out (O, TB).  Batch sits on the lane axis.

    # --- layer 1: fused (noise ++ sample) -> relu(W1 @ x^T + b1) ------------
    h = jnp.dot(w1_ref[...], xT_ref[...],
                preferred_element_type=jnp.float32)                    # (H, TB)
    h = jnp.maximum(h + b1_ref[...], 0.0)

    # --- layer 2: the only matmul with real FLOPs ---------------------------
    h2 = jnp.dot(w2_ref[...], h.astype(w2_ref.dtype),
                 preferred_element_type=jnp.float32)                   # (H, TB)
    h2 = jnp.maximum(h2 + b2_ref[...], 0.0)

    # --- layer 3 (output_size == 1): (1,H)@(H,TB) -> lane-dense (1, TB) -----
    y = jnp.dot(w3_ref[...], h2.astype(w3_ref.dtype),
                preferred_element_type=jnp.float32)                    # (O, TB)
    out_ref[...] = (y + b3_ref[0, 0]).astype(out_ref.dtype)


def _choose_tiling(batch, batch_tile):
    """Lane-dense batch tiles: TB multiple of 128; grid >= 2 (and even) when possible."""
    tb_cap = max(128, _round_up(min(batch_tile, max(batch, 1)), 128))
    bp_min = _round_up(batch, 128)
    n = pl.cdiv(bp_min, tb_cap)
    if n == 1 and bp_min >= 256:
        n = 2                       # v7x megacore: give each TensorCore >= 1 step
    if n > 1 and n % 2 == 1:
        n += 1                      # even grid -> balanced split across 2 TCs
    tb = _round_up(pl.cdiv(bp_min, n), 128)   # shrink tile to limit padding waste
    return tb, n * tb, n


def mine_forward(noise, sample, params, *, batch_tile=4096, use_bf16=False):
    """Mine forward in one Pallas kernel, batch-tiled with batch on the lane axis."""
    w1, b1, w2, b2, w3, b3 = params      # (H,IN) (H,1) (H,H) (H,1) (O,H) (1,O)
    H, IN = w1.shape
    O = w3.shape[0]                      # = 1 for this module

    x = jnp.concatenate([noise, sample], axis=-1).astype(jnp.float32)  # (B, IN)
    B = x.shape[0]
    TB, Bp, n_tiles = _choose_tiling(B, batch_tile)

    mm_dtype = jnp.bfloat16 if use_bf16 else jnp.float32
    xT = jnp.pad(x, ((0, Bp - B), (0, 0))).T.astype(mm_dtype)          # (IN, Bp)
    w1m = w1.astype(mm_dtype)
    w2m = w2.astype(mm_dtype)
    w3m = w3.astype(mm_dtype)

    ds = jnp.dtype(mm_dtype).itemsize
    flops = 2 * Bp * (IN * H + H * H + O * H)
    bytes_accessed = (ds * (Bp * IN + H * IN + H * H + O * H)
                      + 4 * (2 * H + O + Bp * O))

    out = pl.pallas_call(
        mine_kernel,
        out_shape=jax.ShapeDtypeStruct((O, Bp), jnp.float32),
        grid=(n_tiles,),
        in_specs=[
            pl.BlockSpec((IN, TB), lambda i: (0, i)),    # x^T, batch tiled on lanes
            pl.BlockSpec((H, IN), lambda i: (0, 0)),     # fused fc1 weights (resident)
            pl.BlockSpec((H, 1), lambda i: (0, 0)),      # fc1_bias column
            pl.BlockSpec((H, H), lambda i: (0, 0)),      # fc2.weight
            pl.BlockSpec((H, 1), lambda i: (0, 0)),      # fc2.bias column
            pl.BlockSpec((O, H), lambda i: (0, 0)),      # fc3.weight
            pl.BlockSpec(memory_space=pltpu.MemorySpace.SMEM),  # fc3.bias scalar
        ],
        out_specs=pl.BlockSpec((O, TB), lambda i: (0, i)),
        compiler_params=pltpu.CompilerParams(
            dimension_semantics=("parallel",),
            vmem_limit_bytes=32 * 1024 * 1024,
        ),
        cost_estimate=pl.CostEstimate(
            flops=flops, transcendentals=0, bytes_accessed=bytes_accessed),
    )(xT, w1m, b1, w2m, b2, w3m, b3)
    return out[:, :B].T                                                 # (B, O)


def init_params(key, noise_size=3, sample_size=2, output_size=1, hidden_size=128):
    """kaiming_normal init (std = sqrt(2/fan_in)), biases zero, kernel layout.

    fc1_noise / fc1_sample weights are stacked into one (hidden, noise+sample)
    matrix; fc2/fc3 keep torch's (out, in) row layout (feature-major kernel wants
    exactly that).  Biases are stored as (hidden, 1) columns; fc3 bias is (1, 1)."""
    k1, k2, k3, k4 = jax.random.split(key, 4)

    def kaiming(k, fan_out, fan_in):
        std = (2.0 / fan_in) ** 0.5
        return (std * jax.random.normal(k, (fan_out, fan_in))).astype(jnp.float32)

    w1n = kaiming(k1, hidden_size, noise_size)           # fc1_noise.weight
    w1s = kaiming(k2, hidden_size, sample_size)          # fc1_sample.weight
    w1 = jnp.concatenate([w1n, w1s], axis=1)             # (H, IN) fused
    b1 = jnp.zeros((hidden_size, 1), jnp.float32)        # fc1_bias
    w2 = kaiming(k3, hidden_size, hidden_size)           # fc2.weight
    b2 = jnp.zeros((hidden_size, 1), jnp.float32)        # fc2.bias
    w3 = kaiming(k4, output_size, hidden_size)           # fc3.weight
    b3 = jnp.zeros((1, output_size), jnp.float32)        # fc3.bias
    return (w1, b1, w2, b2, w3, b3)


def mine_forward_ref(noise, sample, params):
    """Pure-JAX reference for correctness checking."""
    w1, b1, w2, b2, w3, b3 = params
    x = jnp.concatenate([noise, sample], axis=-1)
    h = jax.nn.relu(x @ w1.T + b1[:, 0])
    h2 = jax.nn.relu(h @ w2.T + b2[:, 0])
    return h2 @ w3.T + b3[0]


if __name__ == "__main__":
    key = jax.random.PRNGKey(0)
    k_params, k_n1, k_s1, k_n2, k_s2 = jax.random.split(key, 5)

    NOISE, SAMPLE, HIDDEN, OUT = 3, 2, 128, 1
    params = init_params(k_params, NOISE, SAMPLE, OUT, HIDDEN)

    # Small batch: single 128-row lane tile, exercises the pad + slice path.
    B1 = 8
    noise1 = jax.random.normal(k_n1, (B1, NOISE), dtype=jnp.float32)
    sample1 = jax.random.normal(k_s1, (B1, SAMPLE), dtype=jnp.float32)
    out1 = jax.block_until_ready(mine_forward(noise1, sample1, params))
    ref1 = mine_forward_ref(noise1, sample1, params)
    assert out1.shape == (B1, OUT), out1.shape
    assert jnp.allclose(out1, ref1, atol=1e-4, rtol=1e-4), "mismatch (B=8, f32)"

    # Larger, non-multiple-of-128 batch: exercises the multi-tile (grid >= 2) path.
    B2 = 300
    noise2 = jax.random.normal(k_n2, (B2, NOISE), dtype=jnp.float32)
    sample2 = jax.random.normal(k_s2, (B2, SAMPLE), dtype=jnp.float32)
    out2 = jax.block_until_ready(mine_forward(noise2, sample2, params))
    ref2 = mine_forward_ref(noise2, sample2, params)
    assert out2.shape == (B2, OUT), out2.shape
    assert jnp.allclose(out2, ref2, atol=1e-4, rtol=1e-4), "mismatch (B=300, f32)"

    # bf16 matmul operands (f32 accumulate) -- looser tolerance.
    out3 = jax.block_until_ready(
        mine_forward(noise2, sample2, params, use_bf16=True))
    assert out3.shape == (B2, OUT), out3.shape
    assert jnp.allclose(out3, ref2, atol=0.25, rtol=0.05), "mismatch (B=300, bf16)"

    print("KERNEL_OK")
</pallas_src>

<mosaic_0001>
module attributes {stable_mosaic.version = 11 : i64} {
  func.func @mine_kernel(%arg0: i32, %arg1: memref<5x128xf32, #tpu.memory_space<vmem>>, %arg2: memref<128x5xf32, #tpu.memory_space<vmem>>, %arg3: memref<128x1xf32, #tpu.memory_space<vmem>>, %arg4: memref<128x128xf32, #tpu.memory_space<vmem>>, %arg5: memref<128x1xf32, #tpu.memory_space<vmem>>, %arg6: memref<1x128xf32, #tpu.memory_space<vmem>>, %arg7: memref<1x1xf32, #tpu.memory_space<smem>>, %arg8: memref<1x128xf32, #tpu.memory_space<vmem>>) attributes {dimension_semantics = [#tpu.dimension_semantics<parallel>], iteration_bounds = array<i64: 1>, scalar_prefetch = 0 : i64, scratch_operands = 0 : i64, tpu.core_type = #tpu.core_type<tc>, window_params = [{transform_indices = @transform_0, window_bounds = array<i64: 5, 128>}, {pipeline_mode = #tpu.pipeline_mode<synchronous>, transform_indices = @transform_1, window_bounds = array<i64: 128, 5>}, {pipeline_mode = #tpu.pipeline_mode<synchronous>, transform_indices = @transform_2, window_bounds = array<i64: 128, 1>}, {pipeline_mode = #tpu.pipeline_mode<synchronous>, transform_indices = @transform_3, window_bounds = array<i64: 128, 128>}, {pipeline_mode = #tpu.pipeline_mode<synchronous>, transform_indices = @transform_4, window_bounds = array<i64: 128, 1>}, {pipeline_mode = #tpu.pipeline_mode<synchronous>, transform_indices = @transform_5, window_bounds = array<i64: 1, 128>}, {transform_indices = @transform_6, window_bounds = array<i64: 1, 1>}, {transform_indices = @transform_7, window_bounds = array<i64: 1, 128>}]} {
    %c0 = arith.constant 0 : index
    %c0_0 = arith.constant 0 : index
    %0 = vector.load %arg2[%c0, %c0_0] : memref<128x5xf32, #tpu.memory_space<vmem>>, vector<128x5xf32>
    %c0_1 = arith.constant 0 : index
    %c0_2 = arith.constant 0 : index
    %1 = vector.load %arg1[%c0_1, %c0_2] : memref<5x128xf32, #tpu.memory_space<vmem>>, vector<5x128xf32>
    %cst = arith.constant dense<0.000000e+00> : vector<128x128xf32>
    %2 = tpu.matmul %0, %1, %cst {dimension_numbers = #tpu.dot_dimension_numbers<[1], [0], [0], [1], [0, 0, 1, 1], [], []>} : vector<128x5xf32>, vector<5x128xf32>, vector<128x128xf32> -> vector<128x128xf32>
    %c0_3 = arith.constant 0 : index
    %c0_4 = arith.constant 0 : index
    %3 = vector.load %arg3[%c0_3, %c0_4] : memref<128x1xf32, #tpu.memory_space<vmem>>, vector<128x1xf32>
    %4 = vector.broadcast %3 : vector<128x1xf32> to vector<128x128xf32>
    %5 = arith.addf %2, %4 : vector<128x128xf32>
    %cst_5 = arith.constant 0.000000e+00 : f32
    %6 = vector.broadcast %cst_5 : f32 to vector<128x128xf32>
    %7 = arith.maximumf %5, %6 : vector<128x128xf32>
    %c0_6 = arith.constant 0 : index
    %c0_7 = arith.constant 0 : index
    %8 = vector.load %arg4[%c0_6, %c0_7] : memref<128x128xf32, #tpu.memory_space<vmem>>, vector<128x128xf32>
    %cst_8 = arith.constant dense<0.000000e+00> : vector<128x128xf32>
    %9 = tpu.matmul %8, %7, %cst_8 {dimension_numbers = #tpu.dot_dimension_numbers<[1], [0], [0], [1], [0, 0, 1, 1], [], []>} : vector<128x128xf32>, vector<128x128xf32>, vector<128x128xf32> -> vector<128x128xf32>
    %c0_9 = arith.constant 0 : index
    %c0_10 = arith.constant 0 : index
    %10 = vector.load %arg5[%c0_9, %c0_10] : memref<128x1xf32, #tpu.memory_space<vmem>>, vector<128x1xf32>
    %11 = vector.broadcast %10 : vector<128x1xf32> to vector<128x128xf32>
    %12 = arith.addf %9, %11 : vector<128x128xf32>
    %cst_11 = arith.constant 0.000000e+00 : f32
    %13 = vector.broadcast %cst_11 : f32 to vector<128x128xf32>
    %14 = arith.maximumf %12, %13 : vector<128x128xf32>
    %c0_12 = arith.constant 0 : index
    %c0_13 = arith.constant 0 : index
    %15 = vector.load %arg6[%c0_12, %c0_13] : memref<1x128xf32, #tpu.memory_space<vmem>>, vector<1x128xf32>
    %cst_14 = arith.constant dense<0.000000e+00> : vector<1x128xf32>
    %16 = tpu.matmul %15, %14, %cst_14 {dimension_numbers = #tpu.dot_dimension_numbers<[1], [0], [0], [1], [0, 0, 1, 1], [], []>} : vector<1x128xf32>, vector<128x128xf32>, vector<1x128xf32> -> vector<1x128xf32>
    %c0_15 = arith.constant 0 : index
    %c0_16 = arith.constant 0 : index
    %17 = memref.load %arg7[%c0_15, %c0_16] : memref<1x1xf32, #tpu.memory_space<smem>>
    %18 = vector.broadcast %17 : f32 to vector<1x128xf32>
    %19 = arith.addf %16, %18 : vector<1x128xf32>
    %c0_17 = arith.constant 0 : index
    %c0_18 = arith.constant 0 : index
    %20 = vector.load %arg8[%c0_17, %c0_18] : memref<1x128xf32, #tpu.memory_space<vmem>>, vector<1x128xf32>
    tpu.vector_store %arg8[%c0_17, %c0_18], %19 {strides = array<i32>} : memref<1x128xf32, #tpu.memory_space<vmem>>, vector<1x128xf32>,
    return
  }
  func.func @transform_0(%arg0: i32) -> (i32, i32) {
    %c0_i32 = arith.constant 0 : i32
    %c0_i32_0 = arith.constant 0 : i32
    return %c0_i32, %arg0 : i32, i32
  }
  func.func @transform_1(%arg0: i32) -> (i32, i32) {
    %c0_i32 = arith.constant 0 : i32
    %c0_i32_0 = arith.constant 0 : i32
    %c0_i32_1 = arith.constant 0 : i32
    return %c0_i32, %c0_i32_0 : i32, i32
  }
  func.func @transform_2(%arg0: i32) -> (i32, i32) {
    %c0_i32 = arith.constant 0 : i32
    %c0_i32_0 = arith.constant 0 : i32
    %c0_i32_1 = arith.constant 0 : i32
    return %c0_i32, %c0_i32_0 : i32, i32
  }
  func.func @transform_3(%arg0: i32) -> (i32, i32) {
    %c0_i32 = arith.constant 0 : i32
    %c0_i32_0 = arith.constant 0 : i32
    %c0_i32_1 = arith.constant 0 : i32
    return %c0_i32, %c0_i32_0 : i32, i32
  }
  func.func @transform_4(%arg0: i32) -> (i32, i32) {
    %c0_i32 = arith.constant 0 : i32
    %c0_i32_0 = arith.constant 0 : i32
    %c0_i32_1 = arith.constant 0 : i32
    return %c0_i32, %c0_i32_0 : i32, i32
  }
  func.func @transform_5(%arg0: i32) -> (i32, i32) {
    %c0_i32 = arith.constant 0 : i32
    %c0_i32_0 = arith.constant 0 : i32
    %c0_i32_1 = arith.constant 0 : i32
    return %c0_i32, %c0_i32_0 : i32, i32
  }
  func.func @transform_6(%arg0: i32) -> (i32, i32) {
    %c0_i32 = arith.constant 0 : i32
    %c0_i32_0 = arith.constant 0 : i32
    %c0_i32_1 = arith.constant 0 : i32
    return %c0_i32, %c0_i32_0 : i32, i32
  }
  func.func @transform_7(%arg0: i32) -> (i32, i32) {
    %c0_i32 = arith.constant 0 : i32
    %c0_i32_0 = arith.constant 0 : i32
    return %c0_i32, %arg0 : i32, i32
  }
}

</mosaic_0001>

<llo_original>
// kernel: tpu_custom_call.1
$region0: #{tpu_custom_call.1}
  #allocation0 [shape = 'u32[]', space=smem, size = 0x4, offset = 0x4, fixed_abs, tag = 'smem constant byte address 0x4 - core index']
  #allocation1 [shape = 'u32[144,128]{1,0:T(1,128)}', space=vmem, size = 0x12000, scoped, tag = 'internal scratch']
  #allocation2 [shape = 'f32[1,1]{1,0:T(1,128)S(6)}', space=smem, size = 0x200, scoped, tag = 'scoped memory for tpu_custom_call.1']
  %s0 = inlined_call_operand.vmem [shape: f32[5,128], index: 0, kind: input, shape index: {}]
  %s1 = inlined_call_operand.vmem [shape: f32[128,5], index: 1, kind: input, shape index: {}]
  %s2 = inlined_call_operand.vmem [shape: f32[128,1], index: 2, kind: input, shape index: {}]
  %s3 = inlined_call_operand.vmem [shape: f32[128,128], index: 3, kind: input, shape index: {}]
  %s4 = inlined_call_operand.vmem [shape: f32[128,1], index: 4, kind: input, shape index: {}]
  %s5 = inlined_call_operand.vmem [shape: f32[1,128], index: 5, kind: input, shape index: {}]
  %s6 = inlined_call_operand.<no memory space> [shape: f32[1,1], index: 6, kind: input, shape index: {}]
  %s7 = inlined_call_operand.hbm [shape: f32[1,128], index: 7, kind: output, shape index: {}]
  %s8 = sld [smem:[#allocation0]]
  $region38: #{tpu_custom_call.1} parent=0
    _
  %s10 = ssub.s32 1, %s8
  %s11 = scalar_select 0, %s10, %s8
  %12 = sst [smem:[#allocation2]] %s6
  $region1: #{tpu_custom_call.1} parent=0
    #allocation3 [shape = 'u8[512]{0}', space=vmem, size = 0x400, scoped, tag = 'output window, operand 0, single buffered']
    #allocation4 [shape = 's32[1]{0}', space=sflag, size = 0x4, scoped, tag = 'scoped memory for tpu_custom_call.1']
    %13 = vsyncpa [#allocation4], 0
    // Predicated region
    $region2: #{tpu_custom_call.1} parent=1 // pred_check
      _
    $region3: #{tpu_custom_call.1} parent=1 // pred_check_branch
      %15 = sbr.rel (0) target = $region5
    $region4: #{tpu_custom_call.1} parent=1 // pred_region
      _
    $region5: #{tpu_custom_call.1} parent=1 // pred_fallthru
      _
    // Predicated region
    $region6: #{tpu_custom_call.1} parent=1 // pred_check
      _
    $region7: #{tpu_custom_call.1} parent=1 // pred_check_branch
      %17 = sbr.rel (0) target = $region9
    $region8: #{tpu_custom_call.1} parent=1 // pred_region
      _
    $region9: #{tpu_custom_call.1} parent=1 // pred_fallthru
      _
    // Predicated region
    $region10: #{tpu_custom_call.1} parent=1 // pred_check
      _
    $region11: #{tpu_custom_call.1} parent=1 // pred_check_branch
      %19 = sbr.rel (0) target = $region13
    $region12: #{tpu_custom_call.1} parent=1 // pred_region
      _
    $region13: #{tpu_custom_call.1} parent=1 // pred_fallthru
      _
    // Predicated region
    $region14: #{tpu_custom_call.1} parent=1 // pred_check
      _
    $region15: #{tpu_custom_call.1} parent=1 // pred_check_branch
      %21 = sbr.rel (0) target = $region17
    $region16: #{tpu_custom_call.1} parent=1 // pred_region
      _
    $region17: #{tpu_custom_call.1} parent=1 // pred_fallthru
      _
    // Predicated region
    $region18: #{tpu_custom_call.1} parent=1 // pred_check
      _
    $region19: #{tpu_custom_call.1} parent=1 // pred_check_branch
      %23 = sbr.rel (0) target = $region21
    $region20: #{tpu_custom_call.1} parent=1 // pred_region
      _
    $region21: #{tpu_custom_call.1} parent=1 // pred_fallthru
      _
    // Predicated region
    $region22: #{tpu_custom_call.1} parent=1 // pred_check
      _
    $region23: #{tpu_custom_call.1} parent=1 // pred_check_branch
      %25 = sbr.rel (0) target = $region25
    $region24: #{tpu_custom_call.1} parent=1 // pred_region
      _
    $region25: #{tpu_custom_call.1} parent=1 // pred_fallthru
      _
    // Predicated region
    $region26: #{tpu_custom_call.1} parent=1 // pred_check
      _
    $region27: #{tpu_custom_call.1} parent=1 // pred_check_branch
      %27 = sbr.rel (0) target = $region29
    $region28: #{tpu_custom_call.1} parent=1 // pred_region
      _
    $region29: #{tpu_custom_call.1} parent=1 // pred_fallthru
      _
    %v28 = vld [vmem:[%s1] sm:$0xff]
    %v29 = vld [vmem:[%s1 + $0x8] sm:$0xff]
    %v30 = vld [vmem:[%s1 + $0x10] sm:$0xff]
    %v31 = vld [vmem:[%s1 + $0x18] sm:$0xff]
    %v32 = vld [vmem:[%s1 + $0x20] sm:$0xff]
    %v33 = vld [vmem:[%s1 + $0x28] sm:$0xff]
    %v34 = vld [vmem:[%s1 + $0x30] sm:$0xff]
    %v35 = vld [vmem:[%s1 + $0x38] sm:$0xff]
    %v36 = vld [vmem:[%s1 + $0x40] sm:$0xff]
    %v37 = vld [vmem:[%s1 + $0x48] sm:$0xff]
    %v38 = vld [vmem:[%s1 + $0x50] sm:$0xff]
    %v39 = vld [vmem:[%s1 + $0x58] sm:$0xff]
    %v40 = vld [vmem:[%s1 + $0x60] sm:$0xff]
    %v41 = vld [vmem:[%s1 + $0x68] sm:$0xff]
    %v42 = vld [vmem:[%s1 + $0x70] sm:$0xff]
    %v43 = vld [vmem:[%s1 + $0x78] sm:$0xff]
    %v44 = vld [vmem:[%s0] sm:$0x1f]
    %v45 = vld [vmem:[%s2] sm:$0xff]
    %v46 = vld [vmem:[%s2 + $0x8] sm:$0xff]
    %v47 = vld [vmem:[%s2 + $0x10] sm:$0xff]
    %v48 = vld [vmem:[%s2 + $0x18] sm:$0xff]
    %v49 = vld [vmem:[%s2 + $0x20] sm:$0xff]
    %v50 = vld [vmem:[%s2 + $0x28] sm:$0xff]
    %v51 = vld [vmem:[%s2 + $0x30] sm:$0xff]
    %v52 = vld [vmem:[%s2 + $0x38] sm:$0xff]
    %v53 = vld [vmem:[%s2 + $0x40] sm:$0xff]
    %v54 = vld [vmem:[%s2 + $0x48] sm:$0xff]
    %v55 = vld [vmem:[%s2 + $0x50] sm:$0xff]
    %v56 = vld [vmem:[%s2 + $0x58] sm:$0xff]
    %v57 = vld [vmem:[%s2 + $0x60] sm:$0xff]
    %v58 = vld [vmem:[%s2 + $0x68] sm:$0xff]
    %v59 = vld [vmem:[%s2 + $0x70] sm:$0xff]
    %v60 = vld [vmem:[%s2 + $0x78] sm:$0xff]
    %62 = vset.pattern.permute.xlu0 0
    %63 = vperm.xlu0 %62, %v45
    %v64 = vpop.permute.xlu0 %63
    %67 = vset.pattern.permute.xlu0 0
    %68 = vperm.xlu0 %67, %v46
    %v69 = vpop.permute.xlu0 %68
    %72 = vset.pattern.permute.xlu0 0
    %73 = vperm.xlu0 %72, %v47
    %v74 = vpop.permute.xlu0 %73
    %77 = vset.pattern.permute.xlu0 0
    %78 = vperm.xlu0 %77, %v48
    %v79 = vpop.permute.xlu0 %78
    %82 = vset.pattern.permute.xlu0 0
    %83 = vperm.xlu0 %82, %v49
    %v84 = vpop.permute.xlu0 %83
    %87 = vset.pattern.permute.xlu0 0
    %88 = vperm.xlu0 %87, %v50
    %v89 = vpop.permute.xlu0 %88
    %92 = vset.pattern.permute.xlu0 0
    %93 = vperm.xlu0 %92, %v51
    %v94 = vpop.permute.xlu0 %93
    %97 = vset.pattern.permute.xlu0 0
    %98 = vperm.xlu0 %97, %v52
    %v99 = vpop.permute.xlu0 %98
    %102 = vset.pattern.permute.xlu0 0
    %103 = vperm.xlu0 %102, %v53
    %v104 = vpop.permute.xlu0 %103
    %107 = vset.pattern.permute.xlu0 0
    %108 = vperm.xlu0 %107, %v54
    %v109 = vpop.permute.xlu0 %108
    %112 = vset.pattern.permute.xlu0 0
    %113 = vperm.xlu0 %112, %v55
    %v114 = vpop.permute.xlu0 %113
    %117 = vset.pattern.permute.xlu0 0
    %118 = vperm.xlu0 %117, %v56
    %v119 = vpop.permute.xlu0 %118
    %122 = vset.pattern.permute.xlu0 0
    %123 = vperm.xlu0 %122, %v57
    %v124 = vpop.permute.xlu0 %123
    %127 = vset.pattern.permute.xlu0 0
    %128 = vperm.xlu0 %127, %v58
    %v129 = vpop.permute.xlu0 %128
    %132 = vset.pattern.permute.xlu0 0
    %133 = vperm.xlu0 %132, %v59
    %v134 = vpop.permute.xlu0 %133
    %137 = vset.pattern.permute.xlu0 0
    %138 = vperm.xlu0 %137, %v60
    %v139 = vpop.permute.xlu0 %138
    %vm141 = vcmask 39936
    %v143 = vsel %vm141, %v28, 0
    %v146 = vsel %vm141, %v29, 0
    %v149 = vsel %vm141, %v30, 0
    %v152 = vsel %vm141, %v31, 0
    %v155 = vsel %vm141, %v32, 0
    %v158 = vsel %vm141, %v33, 0
    %v161 = vsel %vm141, %v34, 0
    %v164 = vsel %vm141, %v35, 0
    %v167 = vsel %vm141, %v36, 0
    %v170 = vsel %vm141, %v37, 0
    %v173 = vsel %vm141, %v38, 0
    %v176 = vsel %vm141, %v39, 0
    %v179 = vsel %vm141, %v40, 0
    %v182 = vsel %vm141, %v41, 0
    %v185 = vsel %vm141, %v42, 0
    %v188 = vsel %vm141, %v43, 0
    %vm190 = vcmask 1044480
    %v192 = vsel %vm190, %v44, 0
    %194 = vmatprep.subr.mxu0 0.0
    %195 = vmatpush1.msra.mxu0 %v192
    %196 = vmatprep.subr.mxu0 0.0
    %197 = vmatpush1.msra.mxu0 0.0
    %198 = vmatprep.subr.mxu0 0.0
    %199 = vmatpush1.msra.mxu0 0.0
    %200 = vmatprep.subr.mxu0 0.0
    %201 = vmatpush1.msra.mxu0 0.0
    %202 = vmatprep.subr.mxu0 0.0
    %203 = vmatpush1.msra.mxu0 0.0
    %204 = vmatprep.subr.mxu0 0.0
    %205 = vmatpush1.msra.mxu0 0.0
    %206 = vmatprep.subr.mxu0 0.0
    %207 = vmatpush1.msra.mxu0 0.0
    %208 = vmatprep.subr.mxu0 0.0
    %209 = vmatpush1.msra.mxu0 0.0
    %210 = vmatprep.subr.mxu0 0.0
    %211 = vmatpush1.msra.mxu0 0.0
    %212 = vmatprep.subr.mxu0 0.0
    %213 = vmatpush1.msra.mxu0 0.0
    %214 = vmatprep.subr.mxu0 0.0
    %215 = vmatpush1.msra.mxu0 0.0
    %216 = vmatprep.subr.mxu0 0.0
    %217 = vmatpush1.msra.mxu0 0.0
    %218 = vmatprep.subr.mxu0 0.0
    %219 = vmatpush1.msra.mxu0 0.0
    %220 = vmatprep.subr.mxu0 0.0
    %221 = vmatpush1.msra.mxu0 0.0
    %222 = vmatprep.subr.mxu0 0.0
    %223 = vmatpush1.msra.mxu0 0.0
    %224 = vmatprep.subr.mxu0 0.0
    %225 = vmatpush1.msra.mxu0 0.0
    %226 = vmatprep.subr.mxu0 0.0
    %227 = vmatpush1.msra.mxu0 0.0
    %228 = vmatprep.subr.mxu0 0.0
    %229 = vmatpush1.msra.mxu0 0.0
    %230 = vmatprep.subr.mxu0 0.0
    %231 = vmatpush1.msra.mxu0 0.0
    %232 = vmatprep.subr.mxu0 0.0
    %233 = vmatpush1.msra.mxu0 0.0
    %234 = vmatprep.subr.mxu0 0.0
    %235 = vmatpush1.msra.mxu0 0.0
    %236 = vmatprep.subr.mxu0 0.0
    %237 = vmatpush1.msra.mxu0 0.0
    %238 = vmatprep.subr.mxu0 0.0
    %239 = vmatpush1.msra.mxu0 0.0
    %240 = vmatprep.subr.mxu0 0.0
    %241 = vmatpush1.msra.mxu0 0.0
    %242 = vmatprep.subr.mxu0 0.0
    %243 = vmatpush1.msra.mxu0 0.0
    %244 = vmatprep.subr.mxu0 0.0
    %245 = vmatpush1.msra.mxu0 0.0
    %246 = vmatprep.subr.mxu0 0.0
    %247 = vmatpush1.msra.mxu0 0.0
    %248 = vmatprep.subr.mxu0 0.0
    %249 = vmatpush1.msra.mxu0 0.0
    %250 = vmatprep.subr.mxu0 0.0
    %251 = vmatpush1.msra.mxu0 0.0
    %252 = vmatprep.subr.mxu0 0.0
    %253 = vmatpush1.msra.mxu0 0.0
    %254 = vmatprep.subr.mxu0 0.0
    %255 = vmatpush1.msra.mxu0 0.0
    %256 = vmatprep.subr.mxu0 0.0
    %257 = vmatpush1.msra.mxu0 0.0
    %258 = vmatprep.mubr.f32.mxu0 0.0
    %259 = vmatmul.mubr.f32.gmra.mrb[0].mxu0 %v143
    %v260 = vpop.f32.mrb[0].mxu0
    %v261 = vadd.f32 %v64, %v260
    %v262 = vpop.f32.mrb[0].mxu0
    %263 = vmatprep.mubr.f32.mxu0 0.0
    %264 = vmatmul.mubr.f32.gmra.mrb[0].mxu0 %v146
    %v265 = vpop.f32.mrb[0].mxu0
    %v266 = vadd.f32 %v69, %v265
    %v267 = vpop.f32.mrb[0].mxu0
    %268 = vmatprep.mubr.f32.mxu0 0.0
    %269 = vmatmul.mubr.f32.gmra.mrb[0].mxu0 %v149
    %v270 = vpop.f32.mrb[0].mxu0
    %v271 = vadd.f32 %v74, %v270
    %v272 = vpop.f32.mrb[0].mxu0
    %273 = vmatprep.mubr.f32.mxu0 0.0
    %274 = vmatmul.mubr.f32.gmra.mrb[0].mxu0 %v152
    %v275 = vpop.f32.mrb[0].mxu0
    %v276 = vadd.f32 %v79, %v275
    %v277 = vpop.f32.mrb[0].mxu0
    %278 = vmatprep.mubr.f32.mxu0 0.0
    %279 = vmatmul.mubr.f32.gmra.mrb[0].mxu0 %v155
    %v280 = vpop.f32.mrb[0].mxu0
    %v281 = vadd.f32 %v84, %v280
    %v282 = vpop.f32.mrb[0].mxu0
    %283 = vmatprep.mubr.f32.mxu0 0.0
    %284 = vmatmul.mubr.f32.gmra.mrb[0].mxu0 %v158
    %v285 = vpop.f32.mrb[0].mxu0
    %v286 = vadd.f32 %v89, %v285
    %v287 = vpop.f32.mrb[0].mxu0
    %288 = vmatprep.mubr.f32.mxu0 0.0
    %289 = vmatmul.mubr.f32.gmra.mrb[0].mxu0 %v161
    %v290 = vpop.f32.mrb[0].mxu0
    %v291 = vadd.f32 %v94, %v290
    %v292 = vpop.f32.mrb[0].mxu0
    %293 = vmatprep.mubr.f32.mxu0 0.0
    %294 = vmatmul.mubr.f32.gmra.mrb[0].mxu0 %v164
    %v295 = vpop.f32.mrb[0].mxu0
    %v296 = vadd.f32 %v99, %v295
    %v297 = vpop.f32.mrb[0].mxu0
    %298 = vmatprep.mubr.f32.mxu0 0.0
    %299 = vmatmul.mubr.f32.gmra.mrb[0].mxu0 %v167
    %v300 = vpop.f32.mrb[0].mxu0
    %v301 = vadd.f32 %v104, %v300
    %v302 = vpop.f32.mrb[0].mxu0
    %303 = vmatprep.mubr.f32.mxu0 0.0
    %304 = vmatmul.mubr.f32.gmra.mrb[0].mxu0 %v170
    %v305 = vpop.f32.mrb[0].mxu0
    %v306 = vadd.f32 %v109, %v305
    %v307 = vpop.f32.mrb[0].mxu0
    %308 = vmatprep.mubr.f32.mxu0 0.0
    %309 = vmatmul.mubr.f32.gmra.mrb[0].mxu0 %v173
    %v310 = vpop.f32.mrb[0].mxu0
    %v311 = vadd.f32 %v114, %v310
    %v312 = vpop.f32.mrb[0].mxu0
    %313 = vmatprep.mubr.f32.mxu0 0.0
    %314 = vmatmul.mubr.f32.gmra.mrb[0].mxu0 %v176
    %v315 = vpop.f32.mrb[0].mxu0
    %v316 = vadd.f32 %v119, %v315
    %v317 = vpop.f32.mrb[0].mxu0
    %318 = vmatprep.mubr.f32.mxu0 0.0
    %319 = vmatmul.mubr.f32.gmra.mrb[0].mxu0 %v179
    %v320 = vpop.f32.mrb[0].mxu0
    %v321 = vadd.f32 %v124, %v320
    %v322 = vpop.f32.mrb[0].mxu0
    %323 = vmatprep.mubr.f32.mxu0 0.0
    %324 = vmatmul.mubr.f32.gmra.mrb[0].mxu0 %v182
    %v325 = vpop.f32.mrb[0].mxu0
    %v326 = vadd.f32 %v129, %v325
    %v327 = vpop.f32.mrb[0].mxu0
    %328 = vmatprep.mubr.f32.mxu0 0.0
    %329 = vmatmul.mubr.f32.gmra.mrb[0].mxu0 %v185
    %v330 = vpop.f32.mrb[0].mxu0
    %v331 = vadd.f32 %v134, %v330
    %v332 = vpop.f32.mrb[0].mxu0
    %333 = vmatprep.mubr.f32.mxu0 0.0
    %334 = vmatmul.mubr.f32.gmra.mrb[0].mxu0 %v188
    %v335 = vpop.f32.mrb[0].mxu0
    %v336 = vadd.f32 %v139, %v335
    %v337 = vpop.f32.mrb[0].mxu0
    %338 = vdwg.mxu0
    %v339 = vmax.f32 %v261, 0.0
    %v340 = vmax.f32 %v266, 0.0
    %v341 = vmax.f32 %v271, 0.0
    %v342 = vmax.f32 %v276, 0.0
    %v343 = vmax.f32 %v281, 0.0
    %v344 = vmax.f32 %v286, 0.0
    %v345 = vmax.f32 %v291, 0.0
    %v346 = vmax.f32 %v296, 0.0
    %v347 = vmax.f32 %v301, 0.0
    %v348 = vmax.f32 %v306, 0.0
    %v349 = vmax.f32 %v311, 0.0
    %v350 = vmax.f32 %v316, 0.0
    %v351 = vmax.f32 %v321, 0.0
    %v352 = vmax.f32 %v326, 0.0
    %v353 = vmax.f32 %v331, 0.0
    %v354 = vmax.f32 %v336, 0.0
    %v355 = vld [vmem:[%s3] sm:$0xff]
    %v356 = vld [vmem:[%s3 + $0x8] sm:$0xff]
    %v357 = vld [vmem:[%s3 + $0x10] sm:$0xff]
    %v358 = vld [vmem:[%s3 + $0x18] sm:$0xff]
    %v359 = vld [vmem:[%s3 + $0x20] sm:$0xff]
    %v360 = vld [vmem:[%s3 + $0x28] sm:$0xff]
    %v361 = vld [vmem:[%s3 + $0x30] sm:$0xff]
    %v362 = vld [vmem:[%s3 + $0x38] sm:$0xff]
    %v363 = vld [vmem:[%s3 + $0x40] sm:$0xff]
    %v364 = vld [vmem:[%s3 + $0x48] sm:$0xff]
    %v365 = vld [vmem:[%s3 + $0x50] sm:$0xff]
    %v366 = vld [vmem:[%s3 + $0x58] sm:$0xff]
    %v367 = vld [vmem:[%s3 + $0x60] sm:$0xff]
    %v368 = vld [vmem:[%s3 + $0x68] sm:$0xff]
    %v369 = vld [vmem:[%s3 + $0x70] sm:$0xff]
    %v370 = vld [vmem:[%s3 + $0x78] sm:$0xff]
    %v371 = vld [vmem:[%s4] sm:$0xff]
    %v372 = vld [vmem:[%s4 + $0x8] sm:$0xff]
    %v373 = vld [vmem:[%s4 + $0x10] sm:$0xff]
    %v374 = vld [vmem:[%s4 + $0x18] sm:$0xff]
    %v375 = vld [vmem:[%s4 + $0x20] sm:$0xff]
    %v376 = vld [vmem:[%s4 + $0x28] sm:$0xff]
    %v377 = vld [vmem:[%s4 + $0x30] sm:$0xff]
    %v378 = vld [vmem:[%s4 + $0x38] sm:$0xff]
    %v379 = vld [vmem:[%s4 + $0x40] sm:$0xff]
    %v380 = vld [vmem:[%s4 + $0x48] sm:$0xff]
    %v381 = vld [vmem:[%s4 + $0x50] sm:$0xff]
    %v382 = vld [vmem:[%s4 + $0x58] sm:$0xff]
    %v383 = vld [vmem:[%s4 + $0x60] sm:$0xff]
    %v384 = vld [vmem:[%s4 + $0x68] sm:$0xff]
    %v385 = vld [vmem:[%s4 + $0x70] sm:$0xff]
    %v386 = vld [vmem:[%s4 + $0x78] sm:$0xff]
    %388 = vset.pattern.permute.xlu0 0
    %389 = vperm.xlu0 %388, %v371
    %v390 = vpop.permute.xlu0 %389
    %393 = vset.pattern.permute.xlu0 0
    %394 = vperm.xlu0 %393, %v372
    %v395 = vpop.permute.xlu0 %394
    %398 = vset.pattern.permute.xlu0 0
    %399 = vperm.xlu0 %398, %v373
    %v400 = vpop.permute.xlu0 %399
    %403 = vset.pattern.permute.xlu0 0
    %404 = vperm.xlu0 %403, %v374
    %v405 = vpop.permute.xlu0 %404
    %408 = vset.pattern.permute.xlu0 0
    %409 = vperm.xlu0 %408, %v375
    %v410 = vpop.permute.xlu0 %409
    %413 = vset.pattern.permute.xlu0 0
    %414 = vperm.xlu0 %413, %v376
    %v415 = vpop.permute.xlu0 %414
    %418 = vset.pattern.permute.xlu0 0
    %419 = vperm.xlu0 %418, %v377
    %v420 = vpop.permute.xlu0 %419
    %423 = vset.pattern.permute.xlu0 0
    %424 = vperm.xlu0 %423, %v378
    %v425 = vpop.permute.xlu0 %424
    %428 = vset.pattern.permute.xlu0 0
    %429 = vperm.xlu0 %428, %v379
    %v430 = vpop.permute.xlu0 %429
    %433 = vset.pattern.permute.xlu0 0
    %434 = vperm.xlu0 %433, %v380
    %v435 = vpop.permute.xlu0 %434
    %438 = vset.pattern.permute.xlu0 0
    %439 = vperm.xlu0 %438, %v381
    %v440 = vpop.permute.xlu0 %439
    %443 = vset.pattern.permute.xlu0 0
    %444 = vperm.xlu0 %443, %v382
    %v445 = vpop.permute.xlu0 %444
    %448 = vset.pattern.permute.xlu0 0
    %449 = vperm.xlu0 %448, %v383
    %v450 = vpop.permute.xlu0 %449
    %453 = vset.pattern.permute.xlu0 0
    %454 = vperm.xlu0 %453, %v384
    %v455 = vpop.permute.xlu0 %454
    %458 = vset.pattern.permute.xlu0 0
    %459 = vperm.xlu0 %458, %v385
    %v460 = vpop.permute.xlu0 %459
    %463 = vset.pattern.permute.xlu0 0
    %464 = vperm.xlu0 %463, %v386
    %v465 = vpop.permute.xlu0 %464
    %467 = vmatprep.subr.mxu0 0.0
    %468 = vmatpush1.msra.mxu0 %v339
    %469 = vmatprep.subr.mxu0 0.0
    %470 = vmatpush1.msra.mxu0 %v340
    %471 = vmatprep.subr.mxu0 0.0
    %472 = vmatpush1.msra.mxu0 %v341
    %473 = vmatprep.subr.mxu0 0.0
    %474 = vmatpush1.msra.mxu0 %v342
    %475 = vmatprep.subr.mxu0 0.0
    %476 = vmatpush1.msra.mxu0 %v343
    %477 = vmatprep.subr.mxu0 0.0
    %478 = vmatpush1.msra.mxu0 %v344
    %479 = vmatprep.subr.mxu0 0.0
    %480 = vmatpush1.msra.mxu0 %v345
    %481 = vmatprep.subr.mxu0 0.0
    %482 = vmatpush1.msra.mxu0 %v346
    %483 = vmatprep.subr.mxu0 0.0
    %484 = vmatpush1.msra.mxu0 %v347
    %485 = vmatprep.subr.mxu0 0.0
    %486 = vmatpush1.msra.mxu0 %v348
    %487 = vmatprep.subr.mxu0 0.0
    %488 = vmatpush1.msra.mxu0 %v349
    %489 = vmatprep.subr.mxu0 0.0
    %490 = vmatpush1.msra.mxu0 %v350
    %491 = vmatprep.subr.mxu0 0.0
    %492 = vmatpush1.msra.mxu0 %v351
    %493 = vmatprep.subr.mxu0 0.0
    %494 = vmatpush1.msra.mxu0 %v352
    %495 = vmatprep.subr.mxu0 0.0
    %496 = vmatpush1.msra.mxu0 %v353
    %497 = vmatprep.subr.mxu0 0.0
    %498 = vmatpush1.msra.mxu0 %v354
    %499 = vmatprep.subr.mxu0 0.0
    %500 = vmatpush1.msra.mxu0 0.0
    %501 = vmatprep.subr.mxu0 0.0
    %502 = vmatpush1.msra.mxu0 0.0
    %503 = vmatprep.subr.mxu0 0.0
    %504 = vmatpush1.msra.mxu0 0.0
    %505 = vmatprep.subr.mxu0 0.0
    %506 = vmatpush1.msra.mxu0 0.0
    %507 = vmatprep.subr.mxu0 0.0
    %508 = vmatpush1.msra.mxu0 0.0
    %509 = vmatprep.subr.mxu0 0.0
    %510 = vmatpush1.msra.mxu0 0.0
    %511 = vmatprep.subr.mxu0 0.0
    %512 = vmatpush1.msra.mxu0 0.0
    %513 = vmatprep.subr.mxu0 0.0
    %514 = vmatpush1.msra.mxu0 0.0
    %515 = vmatprep.subr.mxu0 0.0
    %516 = vmatpush1.msra.mxu0 0.0
    %517 = vmatprep.subr.mxu0 0.0
    %518 = vmatpush1.msra.mxu0 0.0
    %519 = vmatprep.subr.mxu0 0.0
    %520 = vmatpush1.msra.mxu0 0.0
    %521 = vmatprep.subr.mxu0 0.0
    %522 = vmatpush1.msra.mxu0 0.0
    %523 = vmatprep.subr.mxu0 0.0
    %524 = vmatpush1.msra.mxu0 0.0
    %525 = vmatprep.subr.mxu0 0.0
    %526 = vmatpush1.msra.mxu0 0.0
    %527 = vmatprep.subr.mxu0 0.0
    %528 = vmatpush1.msra.mxu0 0.0
    %529 = vmatprep.subr.mxu0 0.0
    %530 = vmatpush1.msra.mxu0 0.0
    %531 = vmatprep.mubr.f32.mxu0 0.0
    %532 = vmatmul.mubr.f32.gmra.mrb[0].mxu0 %v355
    %v533 = vpop.f32.mrb[0].mxu0
    %v534 = vadd.f32 %v390, %v533
    %v535 = vpop.f32.mrb[0].mxu0
    %536 = vmatprep.mubr.f32.mxu0 0.0
    %537 = vmatmul.mubr.f32.gmra.mrb[0].mxu0 %v356
    %v538 = vpop.f32.mrb[0].mxu0
    %v539 = vadd.f32 %v395, %v538
    %v540 = vpop.f32.mrb[0].mxu0
    %541 = vmatprep.mubr.f32.mxu0 0.0
    %542 = vmatmul.mubr.f32.gmra.mrb[0].mxu0 %v357
    %v543 = vpop.f32.mrb[0].mxu0
    %v544 = vadd.f32 %v400, %v543
    %v545 = vpop.f32.mrb[0].mxu0
    %546 = vmatprep.mubr.f32.mxu0 0.0
    %547 = vmatmul.mubr.f32.gmra.mrb[0].mxu0 %v358
    %v548 = vpop.f32.mrb[0].mxu0
    %v549 = vadd.f32 %v405, %v548
    %v550 = vpop.f32.mrb[0].mxu0
    %551 = vmatprep.mubr.f32.mxu0 0.0
    %552 = vmatmul.mubr.f32.gmra.mrb[0].mxu0 %v359
    %v553 = vpop.f32.mrb[0].mxu0
    %v554 = vadd.f32 %v410, %v553
    %v555 = vpop.f32.mrb[0].mxu0
    %556 = vmatprep.mubr.f32.mxu0 0.0
    %557 = vmatmul.mubr.f32.gmra.mrb[0].mxu0 %v360
    %v558 = vpop.f32.mrb[0].mxu0
    %v559 = vadd.f32 %v415, %v558
    %v560 = vpop.f32.mrb[0].mxu0
    %561 = vmatprep.mubr.f32.mxu0 0.0
    %562 = vmatmul.mubr.f32.gmra.mrb[0].mxu0 %v361
    %v563 = vpop.f32.mrb[0].mxu0
    %v564 = vadd.f32 %v420, %v563
    %v565 = vpop.f32.mrb[0].mxu0
    %566 = vmatprep.mubr.f32.mxu0 0.0
    %567 = vmatmul.mubr.f32.gmra.mrb[0].mxu0 %v362
    %v568 = vpop.f32.mrb[0].mxu0
    %v569 = vadd.f32 %v425, %v568
    %v570 = vpop.f32.mrb[0].mxu0
    %571 = vmatprep.mubr.f32.mxu0 0.0
    %572 = vmatmul.mubr.f32.gmra.mrb[0].mxu0 %v363
    %v573 = vpop.f32.mrb[0].mxu0
    %v574 = vadd.f32 %v430, %v573
    %v575 = vpop.f32.mrb[0].mxu0
    %576 = vmatprep.mubr.f32.mxu0 0.0
    %577 = vmatmul.mubr.f32.gmra.mrb[0].mxu0 %v364
    %v578 = vpop.f32.mrb[0].mxu0
    %v579 = vadd.f32 %v435, %v578
    %v580 = vpop.f32.mrb[0].mxu0
    %581 = vmatprep.mubr.f32.mxu0 0.0
    %582 = vmatmul.mubr.f32.gmra.mrb[0].mxu0 %v365
    %v583 = vpop.f32.mrb[0].mxu0
    %v584 = vadd.f32 %v440, %v583
    %v585 = vpop.f32.mrb[0].mxu0
    %586 = vmatprep.mubr.f32.mxu0 0.0
    %587 = vmatmul.mubr.f32.gmra.mrb[0].mxu0 %v366
    %v588 = vpop.f32.mrb[0].mxu0
    %v589 = vadd.f32 %v445, %v588
    %v590 = vpop.f32.mrb[0].mxu0
    %591 = vmatprep.mubr.f32.mxu0 0.0
    %592 = vmatmul.mubr.f32.gmra.mrb[0].mxu0 %v367
    %v593 = vpop.f32.mrb[0].mxu0
    %v594 = vadd.f32 %v450, %v593
    %v595 = vpop.f32.mrb[0].mxu0
    %596 = vmatprep.mubr.f32.mxu0 0.0
    %597 = vmatmul.mubr.f32.gmra.mrb[0].mxu0 %v368
    %v598 = vpop.f32.mrb[0].mxu0
    %v599 = vadd.f32 %v455, %v598
    %v600 = vpop.f32.mrb[0].mxu0
    %601 = vmatprep.mubr.f32.mxu0 0.0
    %602 = vmatmul.mubr.f32.gmra.mrb[0].mxu0 %v369
    %v603 = vpop.f32.mrb[0].mxu0
    %v604 = vadd.f32 %v460, %v603
    %v605 = vpop.f32.mrb[0].mxu0
    %606 = vmatprep.mubr.f32.mxu0 0.0
    %607 = vmatmul.mubr.f32.gmra.mrb[0].mxu0 %v370
    %v608 = vpop.f32.mrb[0].mxu0
    %v609 = vadd.f32 %v465, %v608
    %v610 = vpop.f32.mrb[0].mxu0
    %611 = vdwg.mxu0
    %v612 = vmax.f32 %v534, 0.0
    %v613 = vmax.f32 %v539, 0.0
    %v614 = vmax.f32 %v544, 0.0
    %v615 = vmax.f32 %v549, 0.0
    %v616 = vmax.f32 %v554, 0.0
    %v617 = vmax.f32 %v559, 0.0
    %v618 = vmax.f32 %v564, 0.0
    %v619 = vmax.f32 %v569, 0.0
    %v620 = vmax.f32 %v574, 0.0
    %v621 = vmax.f32 %v579, 0.0
    %v622 = vmax.f32 %v584, 0.0
    %v623 = vmax.f32 %v589, 0.0
    %v624 = vmax.f32 %v594, 0.0
    %v625 = vmax.f32 %v599, 0.0
    %v626 = vmax.f32 %v604, 0.0
    %v627 = vmax.f32 %v609, 0.0
    %v628 = vld [vmem:[%s5] sm:$0x1]
    %s629 = sld [smem:[#allocation2]]
    %v630 = vstv %s629
    %631 = vmatprep.subr.mxu0 0.0
    %632 = vmatpush1.msra.mxu0 %v612
    %633 = vmatprep.subr.mxu0 0.0
    %634 = vmatpush1.msra.mxu0 %v613
    %635 = vmatprep.subr.mxu0 0.0
    %636 = vmatpush1.msra.mxu0 %v614
    %637 = vmatprep.subr.mxu0 0.0
    %638 = vmatpush1.msra.mxu0 %v615
    %639 = vmatprep.subr.mxu0 0.0
    %640 = vmatpush1.msra.mxu0 %v616
    %641 = vmatprep.subr.mxu0 0.0
    %642 = vmatpush1.msra.mxu0 %v617
    %643 = vmatprep.subr.mxu0 0.0
    %644 = vmatpush1.msra.mxu0 %v618
    %645 = vmatprep.subr.mxu0 0.0
    %646 = vmatpush1.msra.mxu0 %v619
    %647 = vmatprep.subr.mxu0 0.0
    %648 = vmatpush1.msra.mxu0 %v620
    %649 = vmatprep.subr.mxu0 0.0
    %650 = vmatpush1.msra.mxu0 %v621
    %651 = vmatprep.subr.mxu0 0.0
    %652 = vmatpush1.msra.mxu0 %v622
    %653 = vmatprep.subr.mxu0 0.0
    %654 = vmatpush1.msra.mxu0 %v623
    %655 = vmatprep.subr.mxu0 0.0
    %656 = vmatpush1.msra.mxu0 %v624
    %657 = vmatprep.subr.mxu0 0.0
    %658 = vmatpush1.msra.mxu0 %v625
    %659 = vmatprep.subr.mxu0 0.0
    %660 = vmatpush1.msra.mxu0 %v626
    %661 = vmatprep.subr.mxu0 0.0
    %662 = vmatpush1.msra.mxu0 %v627
    %663 = vmatprep.subr.mxu0 0.0
    %664 = vmatpush1.msra.mxu0 0.0
    %665 = vmatprep.subr.mxu0 0.0
    %666 = vmatpush1.msra.mxu0 0.0
    %667 = vmatprep.subr.mxu0 0.0
    %668 = vmatpush1.msra.mxu0 0.0
    %669 = vmatprep.subr.mxu0 0.0
    %670 = vmatpush1.msra.mxu0 0.0
    %671 = vmatprep.subr.mxu0 0.0
    %672 = vmatpush1.msra.mxu0 0.0
    %673 = vmatprep.subr.mxu0 0.0
    %674 = vmatpush1.msra.mxu0 0.0
    %675 = vmatprep.subr.mxu0 0.0
    %676 = vmatpush1.msra.mxu0 0.0
    %677 = vmatprep.subr.mxu0 0.0
    %678 = vmatpush1.msra.mxu0 0.0
    %679 = vmatprep.subr.mxu0 0.0
    %680 = vmatpush1.msra.mxu0 0.0
    %681 = vmatprep.subr.mxu0 0.0
    %682 = vmatpush1.msra.mxu0 0.0
    %683 = vmatprep.subr.mxu0 0.0
    %684 = vmatpush1.msra.mxu0 0.0
    %685 = vmatprep.subr.mxu0 0.0
    %686 = vmatpush1.msra.mxu0 0.0
    %687 = vmatprep.subr.mxu0 0.0
    %688 = vmatpush1.msra.mxu0 0.0
    %689 = vmatprep.subr.mxu0 0.0
    %690 = vmatpush1.msra.mxu0 0.0
    %691 = vmatprep.subr.mxu0 0.0
    %692 = vmatpush1.msra.mxu0 0.0
    %693 = vmatprep.subr.mxu0 0.0
    %694 = vmatpush1.msra.mxu0 0.0
    %695 = vmatprep.mubr.f32.mxu0 0.0
    %696 = vmatmul.mubr.f32.gmra.mrb[0].mxu0 %v628
    %v697 = vpop.f32.mrb[0].mxu0
    %v698 = vadd.f32 %v630, %v697
    %v699 = vpop.f32.mrb[0].mxu0
    %700 = vdwg.mxu0
    %701 = vst [vmem:[#allocation3] sm:$0x1] %v698
    // Predicated region
    $region30: #{tpu_custom_call.1} parent=1 // pred_check
      _
    $region31: #{tpu_custom_call.1} parent=1 // pred_check_branch
      %703 = sbr.rel (0) target = $region33
    $region32: #{tpu_custom_call.1} parent=1 // pred_region
      %s705 = ssub.s32 16, 16
      %706 = vsyncadd [#allocation4], %s705
      %s708 = sshll.u32 [#allocation3], 4
      %s709 = int_to_ptr.vmem [resolvable:$true] %s708
      %711 = dma.vmem_to_hbm [thread:$0]  %s709, 16, %s7, [#allocation4]
    $region33: #{tpu_custom_call.1} parent=1 // pred_fallthru
      _
    // Predicated region
    $region34: #{tpu_custom_call.1} parent=1 // pred_check
      _
    $region35: #{tpu_custom_call.1} parent=1 // pred_check_branch
      %713 = sbr.rel (0) target = $region37
    $region36: #{tpu_custom_call.1} parent=1 // pred_region
      %714 = dma.done [#allocation4], 16
    $region37: #{tpu_custom_call.1} parent=1 // pred_fallthru
      _
    %715 = vsyncpa [#allocation4], 1

</llo_original>
